<compile_context>
chip_gen: v7x
topology: tpu7x:2x2x1
jax: 0.10.0
libtpu: 0.0.40
codegen_flags: <defaults>
</compile_context>

<pallas_src>
import jax
import jax.numpy as jnp
from jax.experimental import pallas as pl
from jax.experimental.pallas import tpu as pltpu


def _round_up(x, m):
    return (x + m - 1) // m * m


def _cdiv(a, b):
    return (a + b - 1) // b


def actor_critic_kernel(x_ref, w1_ref, w2_ref, bias_ref, out_ref):
    hpad = w1_ref.shape[1]      # padded fused hidden width (2H rounded up to 128)
    opad = w2_ref.shape[1]      # padded fused head width (1+n_outputs rounded up to 128)
    out_cat = out_ref.shape[1]  # useful output columns: 1 (value) + n_outputs (mu)

    # bf16 MXU inputs, f32 accumulate.  Epilogue (bias + ReLU) stays f32.
    x = x_ref[...].astype(jnp.bfloat16)

    # fused layer 1: [tm, n_in] @ [n_in, hpad]; padded W1 cols / b1 lanes are exactly 0,
    # so padded hidden lanes are relu(0) = 0 and cannot leak through W2.
    h = jnp.maximum(
        jnp.dot(x, w1_ref[...], preferred_element_type=jnp.float32)
        + bias_ref[0:1, :hpad],
        0.0,
    )

    # fused layer 2 (block-diagonal W2): col 0 = value, cols 1..n_outputs = mu
    y = (
        jnp.dot(h.astype(jnp.bfloat16), w2_ref[...],
                preferred_element_type=jnp.float32)
        + bias_ref[1:2, :opad]
    )

    # Narrow writeback: only the useful columns go back to HBM.
    out_ref[...] = y[:, :out_cat]


def pack_params(params, n_outputs, hidden_size):
    """Pack the 9 nn.Linear/log_std tensors into 3 lane-padded slabs + log_std."""
    (w1c, b1c, w2c, b2c, w1a, b1a, w2a, b2a, log_std) = params
    n_inputs = w1c.shape[0]
    H = hidden_size
    H2 = 2 * H
    out_cat = 1 + n_outputs
    hpad = _round_up(H2, 128)   # keep at 128 for H<=64; do NOT over-pad to 256
    opad = _round_up(out_cat, 128)
    blane = max(hpad, opad)

    # fused first-layer weight: [n_inputs, hpad] = [w1c | w1a | zeros]
    w1 = jnp.zeros((n_inputs, hpad), jnp.float32)
    w1 = w1.at[:, :H].set(w1c).at[:, H:H2].set(w1a)

    # block-diagonal second-layer weight: [hpad, opad]
    #   rows 0..H-1,  col 0            -> w2c   (critic head)
    #   rows H..2H-1, cols 1..out_cat  -> w2a   (actor head)
    w2 = jnp.zeros((hpad, opad), jnp.float32)
    w2 = w2.at[:H, 0:1].set(w2c).at[H:H2, 1:out_cat].set(w2a)

    # bias slab (f32): row 0 = fused layer-1 bias, row 1 = fused layer-2 bias
    bias = jnp.zeros((2, blane), jnp.float32)
    bias = bias.at[0, :H].set(b1c[0]).at[0, H:H2].set(b1a[0])
    bias = bias.at[1, 0].set(b2c[0, 0]).at[1, 1:out_cat].set(b2a[0])

    return dict(
        w1=w1.astype(jnp.bfloat16),   # bf16 MXU weights; padding remains exactly zero
        w2=w2.astype(jnp.bfloat16),
        bias=bias,                    # f32 epilogue biases
        log_std=log_std,
        n_outputs=int(n_outputs),
        out_cat=int(out_cat),
    )


def _batch_tiling(B, block_m):
    """Pick (tm, Bp): padding bounded by <8 rows per step; >=2 steps for large B (v7x 2 TCs)."""
    B8 = _round_up(max(B, 8), 8)
    steps = _cdiv(B8, block_m)
    if B8 > 256:
        steps = max(steps, 2)     # v7x: shard the parallel batch axis across both TensorCores
    tm = _round_up(_cdiv(B8, steps), 8)
    Bp = steps * tm
    return tm, Bp


def actor_critic_forward(x, packed, *, block_m=512):
    w1, w2, bias = packed["w1"], packed["w2"], packed["bias"]
    log_std = packed["log_std"]
    out_cat = packed["out_cat"]

    B, n_in = x.shape
    hpad = w1.shape[1]
    opad = w2.shape[1]
    blane = bias.shape[1]

    tm, Bp = _batch_tiling(B, block_m)
    xp = jnp.pad(x, ((0, Bp - B), (0, 0))) if Bp != B else x

    out = pl.pallas_call(
        actor_critic_kernel,
        out_shape=jax.ShapeDtypeStruct((Bp, out_cat), jnp.float32),
        grid_spec=pltpu.PrefetchScalarGridSpec(
            num_scalar_prefetch=0,
            grid=(Bp // tm,),
            in_specs=[
                pl.BlockSpec((tm, n_in), lambda i: (i, 0)),      # x tile (f32, cast in-kernel)
                pl.BlockSpec((n_in, hpad), lambda i: (0, 0)),    # fused W1 (bf16, broadcast)
                pl.BlockSpec((hpad, opad), lambda i: (0, 0)),    # block-diag W2 (bf16, broadcast)
                pl.BlockSpec((2, blane), lambda i: (0, 0)),      # fused biases (f32, broadcast)
            ],
            out_specs=pl.BlockSpec((tm, out_cat), lambda i: (i, 0)),
        ),
        compiler_params=pltpu.CompilerParams(
            dimension_semantics=("parallel",)),
    )(xp, w1, w2, bias)

    value = out[:B, 0:1]
    mu = out[:B, 1:out_cat]
    # std depends only on parameters -> computed in the wrapper (constant-folded by XLA)
    std = jnp.broadcast_to(jnp.exp(log_std), mu.shape)
    # TODO(synk): torch.distributions.Normal has no Pallas equivalent; returning (mu, std).
    return (mu, std), value


def init_params(key, n_inputs, n_outputs, hidden_size, std=0.0):
    """Deterministic synthetic params (shapes match the nn.Linear layers, pre-transposed)."""
    ks = jax.random.split(key, 8)

    def lin(kw, kb, fan_in, fan_out):
        bound = 1.0 / jnp.sqrt(fan_in)
        w = jax.random.uniform(kw, (fan_in, fan_out), jnp.float32, -bound, bound)
        b = jax.random.uniform(kb, (1, fan_out), jnp.float32, -bound, bound)
        return w, b

    w1c, b1c = lin(ks[0], ks[1], n_inputs, hidden_size)
    w2c, b2c = lin(ks[2], ks[3], hidden_size, 1)
    w1a, b1a = lin(ks[4], ks[5], n_inputs, hidden_size)
    w2a, b2a = lin(ks[6], ks[7], hidden_size, n_outputs)
    log_std = jnp.ones((1, n_outputs), jnp.float32) * std
    return (w1c, b1c, w2c, b2c, w1a, b1a, w2a, b2a, log_std)


def reference_forward(x, params):
    (w1c, b1c, w2c, b2c, w1a, b1a, w2a, b2a, log_std) = params
    value = jnp.maximum(x @ w1c + b1c, 0.0) @ w2c + b2c
    mu = jnp.maximum(x @ w1a + b1a, 0.0) @ w2a + b2a
    std = jnp.broadcast_to(jnp.exp(log_std), mu.shape)
    return (mu, std), value


def _check(x, params, packed, tag):
    (mu, std), value = actor_critic_forward(x, packed)
    jax.block_until_ready((mu, std, value))
    (mu_ref, std_ref), value_ref = reference_forward(x, params)
    # bf16 MXU inputs -> loosened tolerance vs the f32 reference
    assert jnp.allclose(mu, mu_ref, atol=3e-2, rtol=3e-2), f"mu mismatch ({tag})"
    assert jnp.allclose(std, std_ref, atol=1e-6), f"std mismatch ({tag})"
    assert jnp.allclose(value, value_ref, atol=3e-2, rtol=3e-2), f"value mismatch ({tag})"


if __name__ == "__main__":
    # Pendulum-like sizes: obs dim 3, action dim 1, hidden 32.
    n_inputs, n_outputs, hidden_size = 3, 1, 32

    key = jax.random.PRNGKey(0)
    k_x1, k_x2, k_p = jax.random.split(key, 3)
    params = init_params(k_p, n_inputs, n_outputs, hidden_size, std=0.0)
    packed = pack_params(params, n_outputs, hidden_size)

    # Small batch (nominal pendulum rollout step): single grid step.
    x_small = jax.random.normal(k_x1, (8, n_inputs), jnp.float32)
    _check(x_small, params, packed, "B=8")

    # Awkward larger batch: exercises minimal padding + >=2 grid steps (v7x megacore path).
    x_big = jax.random.normal(k_x2, (300, n_inputs), jnp.float32)
    _check(x_big, params, packed, "B=300")

    print("KERNEL_OK")
</pallas_src>

<mosaic_0001>
module attributes {stable_mosaic.version = 11 : i64} {
  func.func @actor_critic_kernel(%arg0: i32, %arg1: memref<8x3xf32, #tpu.memory_space<vmem>>, %arg2: memref<3x128xbf16, #tpu.memory_space<vmem>>, %arg3: memref<128x128xbf16, #tpu.memory_space<vmem>>, %arg4: memref<2x128xf32, #tpu.memory_space<vmem>>, %arg5: memref<8x2xf32, #tpu.memory_space<vmem>>) attributes {dimension_semantics = [#tpu.dimension_semantics<parallel>], iteration_bounds = array<i64: 1>, scalar_prefetch = 0 : i64, scratch_operands = 0 : i64, tpu.core_type = #tpu.core_type<tc>, window_params = [{transform_indices = @transform_0, window_bounds = array<i64: 8, 3>}, {pipeline_mode = #tpu.pipeline_mode<synchronous>, transform_indices = @transform_1, window_bounds = array<i64: 3, 128>}, {pipeline_mode = #tpu.pipeline_mode<synchronous>, transform_indices = @transform_2, window_bounds = array<i64: 128, 128>}, {pipeline_mode = #tpu.pipeline_mode<synchronous>, transform_indices = @transform_3, window_bounds = array<i64: 2, 128>}, {transform_indices = @transform_4, window_bounds = array<i64: 8, 2>}]} {
    %c0 = arith.constant 0 : index
    %c0_0 = arith.constant 0 : index
    %0 = vector.load %arg1[%c0, %c0_0] : memref<8x3xf32, #tpu.memory_space<vmem>>, vector<8x3xf32>
    %1 = arith.truncf %0 : vector<8x3xf32> to vector<8x3xbf16>
    %c0_1 = arith.constant 0 : index
    %c0_2 = arith.constant 0 : index
    %2 = vector.load %arg2[%c0_1, %c0_2] : memref<3x128xbf16, #tpu.memory_space<vmem>>, vector<3x128xbf16>
    %cst = arith.constant dense<0.000000e+00> : vector<8x128xf32>
    %3 = tpu.matmul %1, %2, %cst {dimension_numbers = #tpu.dot_dimension_numbers<[1], [0], [0], [1], [0, 0, 1, 1], [], []>} : vector<8x3xbf16>, vector<3x128xbf16>, vector<8x128xf32> -> vector<8x128xf32>
    %c0_3 = arith.constant 0 : index
    %c0_4 = arith.constant 0 : index
    %4 = vector.load %arg4[%c0_3, %c0_4] : memref<2x128xf32, #tpu.memory_space<vmem>>, vector<1x128xf32>
    %5 = vector.broadcast %4 : vector<1x128xf32> to vector<8x128xf32>
    %6 = arith.addf %3, %5 : vector<8x128xf32>
    %cst_5 = arith.constant 0.000000e+00 : f32
    %7 = vector.broadcast %cst_5 : f32 to vector<8x128xf32>
    %8 = arith.maximumf %6, %7 : vector<8x128xf32>
    %9 = arith.truncf %8 : vector<8x128xf32> to vector<8x128xbf16>
    %c0_6 = arith.constant 0 : index
    %c0_7 = arith.constant 0 : index
    %10 = vector.load %arg3[%c0_6, %c0_7] : memref<128x128xbf16, #tpu.memory_space<vmem>>, vector<128x128xbf16>
    %cst_8 = arith.constant dense<0.000000e+00> : vector<8x128xf32>
    %11 = tpu.matmul %9, %10, %cst_8 {dimension_numbers = #tpu.dot_dimension_numbers<[1], [0], [0], [1], [0, 0, 1, 1], [], []>} : vector<8x128xbf16>, vector<128x128xbf16>, vector<8x128xf32> -> vector<8x128xf32>
    %c1 = arith.constant 1 : index
    %c0_9 = arith.constant 0 : index
    %12 = vector.load %arg4[%c1, %c0_9] : memref<2x128xf32, #tpu.memory_space<vmem>>, vector<1x128xf32>
    %13 = vector.broadcast %12 : vector<1x128xf32> to vector<8x128xf32>
    %14 = arith.addf %11, %13 : vector<8x128xf32>
    %15 = vector.extract_strided_slice %14 {offsets = [0, 0], sizes = [8, 2], strides = [1, 1]} : vector<8x128xf32> to vector<8x2xf32>
    %c0_10 = arith.constant 0 : index
    %c0_11 = arith.constant 0 : index
    %16 = vector.load %arg5[%c0_10, %c0_11] : memref<8x2xf32, #tpu.memory_space<vmem>>, vector<8x2xf32>
    tpu.vector_store %arg5[%c0_10, %c0_11], %15 {strides = array<i32>} : memref<8x2xf32, #tpu.memory_space<vmem>>, vector<8x2xf32>,
    return
  }
  func.func @transform_0(%arg0: i32) -> (i32, i32) {
    %c0_i32 = arith.constant 0 : i32
    %c0_i32_0 = arith.constant 0 : i32
    return %arg0, %c0_i32 : i32, i32
  }
  func.func @transform_1(%arg0: i32) -> (i32, i32) {
    %c0_i32 = arith.constant 0 : i32
    %c0_i32_0 = arith.constant 0 : i32
    %c0_i32_1 = arith.constant 0 : i32
    return %c0_i32, %c0_i32_0 : i32, i32
  }
  func.func @transform_2(%arg0: i32) -> (i32, i32) {
    %c0_i32 = arith.constant 0 : i32
    %c0_i32_0 = arith.constant 0 : i32
    %c0_i32_1 = arith.constant 0 : i32
    return %c0_i32, %c0_i32_0 : i32, i32
  }
  func.func @transform_3(%arg0: i32) -> (i32, i32) {
    %c0_i32 = arith.constant 0 : i32
    %c0_i32_0 = arith.constant 0 : i32
    %c0_i32_1 = arith.constant 0 : i32
    return %c0_i32, %c0_i32_0 : i32, i32
  }
  func.func @transform_4(%arg0: i32) -> (i32, i32) {
    %c0_i32 = arith.constant 0 : i32
    %c0_i32_0 = arith.constant 0 : i32
    return %arg0, %c0_i32 : i32, i32
  }
}

</mosaic_0001>

<llo_original>
// kernel: tpu_custom_call.1
$region0: #{tpu_custom_call.1}
  #allocation0 [shape = 'u32[]', space=smem, size = 0x4, offset = 0x4, fixed_abs, tag = 'smem constant byte address 0x4 - core index']
  #allocation1 [shape = 'u32[144,128]{1,0:T(1,128)}', space=vmem, size = 0x12000, scoped, tag = 'internal scratch']
  %s0 = inlined_call_operand.vmem [shape: f32[8,3], index: 0, kind: input, shape index: {}]
  %s1 = inlined_call_operand.vmem [shape: bf16[3,128], index: 1, kind: input, shape index: {}]
  %s2 = inlined_call_operand.hbm [shape: bf16[128,128], index: 2, kind: input, shape index: {}]
  %s3 = inlined_call_operand.vmem [shape: f32[2,128], index: 3, kind: input, shape index: {}]
  %s4 = inlined_call_operand.vmem [shape: f32[8,2], index: 4, kind: output, shape index: {}]
  %s5 = sld [smem:[#allocation0]]
  $region30: #{tpu_custom_call.1} parent=0
    _
  %s7 = ssub.s32 1, %s5
  %s8 = scalar_select 0, %s7, %s5
  $region1: #{tpu_custom_call.1} parent=0
    #allocation2 [shape = 'u8[32768]{0}', space=vmem, size = 0x8000, scoped, tag = 'input window, operand 2, single buffered']
    #allocation3 [shape = 's32[1]{0}', space=sflag, size = 0x4, scoped, tag = 'scoped memory for tpu_custom_call.1']
    %9 = vsyncpa [#allocation3], 0
    // Predicated region
    $region2: #{tpu_custom_call.1} parent=1 // pred_check
      _
    $region3: #{tpu_custom_call.1} parent=1 // pred_check_branch
      %11 = sbr.rel (0) target = $region5
    $region4: #{tpu_custom_call.1} parent=1 // pred_region
      _
    $region5: #{tpu_custom_call.1} parent=1 // pred_fallthru
      _
    // Predicated region
    $region6: #{tpu_custom_call.1} parent=1 // pred_check
      _
    $region7: #{tpu_custom_call.1} parent=1 // pred_check_branch
      %13 = sbr.rel (0) target = $region9
    $region8: #{tpu_custom_call.1} parent=1 // pred_region
      _
    $region9: #{tpu_custom_call.1} parent=1 // pred_fallthru
      _
    // Predicated region
    $region10: #{tpu_custom_call.1} parent=1 // pred_check
      _
    $region11: #{tpu_custom_call.1} parent=1 // pred_check_branch
      %15 = sbr.rel (0) target = $region13
    $region12: #{tpu_custom_call.1} parent=1 // pred_region
      %s17 = ssub.s32 1024, 1024
      %18 = vsyncadd [#allocation3], %s17
      %s19 = sshll.u32 [#allocation2], 4
      %s20 = int_to_ptr.vmem [resolvable:$true] %s19
      %25 = dma.hbm_to_vmem [thread:$0]  %s2, 1024, %s20, [#allocation3], 64, 64, 4
    $region13: #{tpu_custom_call.1} parent=1 // pred_fallthru
      _
    // Predicated region
    $region14: #{tpu_custom_call.1} parent=1 // pred_check
      _
    $region15: #{tpu_custom_call.1} parent=1 // pred_check_branch
      %27 = sbr.rel (0) target = $region17
    $region16: #{tpu_custom_call.1} parent=1 // pred_region
      _
    $region17: #{tpu_custom_call.1} parent=1 // pred_fallthru
      _
    // Predicated region
    $region18: #{tpu_custom_call.1} parent=1 // pred_check
      _
    $region19: #{tpu_custom_call.1} parent=1 // pred_check_branch
      %29 = sbr.rel (0) target = $region21
    $region20: #{tpu_custom_call.1} parent=1 // pred_region
      %30 = dma.done [#allocation3], 1024
    $region21: #{tpu_custom_call.1} parent=1 // pred_fallthru
      _
    %v32 = vld [vmem:[%s0] sm:$0xff]
    %v33 = vpack.c.bf16 %v32, %v32
    %v34 = vld [vmem:[%s1] sm:$0x3]
    %v35 = vld [vmem:[%s3] sm:$0x1]
    %v36 = vlaneseq
    %v37 = vshrl.u32 %v36, 7
    %v38 = vsub.s32 0, %v37
    %v39 = vrot.slane %v35, %v38
    %vm40 = vcmask 23552
    %v42 = vsel %vm40, %v33, 0
    %vm44 = vcmask 1040384
    %vm45 = vcmask 1041408
    %v46 = vsel %vm44, 4294967295, 65535
    %v47 = vsel %vm45, %v46, 0
    %v49 = vand.u32 %v34, %v47
    %51 = vmatprep.subr.bf16.mxu0 0
    %52 = vmatpush1.bf16.msra.mxu0 %v49
    %53 = vmatprep.subr.bf16.mxu0 0
    %54 = vmatpush1.bf16.msra.mxu0 0
    %55 = vmatprep.subr.bf16.mxu0 0
    %56 = vmatpush1.bf16.msra.mxu0 0
    %57 = vmatprep.subr.bf16.mxu0 0
    %58 = vmatpush1.bf16.msra.mxu0 0
    %59 = vmatprep.subr.bf16.mxu0 0
    %60 = vmatpush1.bf16.msra.mxu0 0
    %61 = vmatprep.subr.bf16.mxu0 0
    %62 = vmatpush1.bf16.msra.mxu0 0
    %63 = vmatprep.subr.bf16.mxu0 0
    %64 = vmatpush1.bf16.msra.mxu0 0
    %65 = vmatprep.subr.bf16.mxu0 0
    %66 = vmatpush1.bf16.msra.mxu0 0
    %67 = vmatprep.subr.bf16.mxu0 0
    %68 = vmatpush1.bf16.msra.mxu0 0
    %69 = vmatprep.subr.bf16.mxu0 0
    %70 = vmatpush1.bf16.msra.mxu0 0
    %71 = vmatprep.subr.bf16.mxu0 0
    %72 = vmatpush1.bf16.msra.mxu0 0
    %73 = vmatprep.subr.bf16.mxu0 0
    %74 = vmatpush1.bf16.msra.mxu0 0
    %75 = vmatprep.subr.bf16.mxu0 0
    %76 = vmatpush1.bf16.msra.mxu0 0
    %77 = vmatprep.subr.bf16.mxu0 0
    %78 = vmatpush1.bf16.msra.mxu0 0
    %79 = vmatprep.subr.bf16.mxu0 0
    %80 = vmatpush1.bf16.msra.mxu0 0
    %81 = vmatprep.subr.bf16.mxu0 0
    %82 = vmatpush1.bf16.msra.mxu0 0
    %83 = vmatprep.mubr.bf16.mxu0 0
    %84 = vmatmul.mubr.bf16.gmra.mrb[0].mxu0 %v42
    %v85 = vpop.f32.mrb[0].mxu0
    %v86 = vadd.f32 %v39, %v85
    %v87 = vpop.f32.mrb[0].mxu0
    %v88 = vpop.f32.mrb[0].mxu0
    %v89 = vpop.f32.mrb[0].mxu0
    %90 = vdwg.mxu0
    %v91 = vmax.f32 %v86, 0.0
    %v92 = vpack.c.bf16 %v91, %v91
    %v93 = vld [vmem:[#allocation2] sm:$0xf]
    %v94 = vld [vmem:[#allocation2 + $0x4] sm:$0xf]
    %v95 = vld [vmem:[#allocation2 + $0x8] sm:$0xf]
    %v96 = vld [vmem:[#allocation2 + $0xc] sm:$0xf]
    %v97 = vld [vmem:[#allocation2 + $0x10] sm:$0xf]
    %v98 = vld [vmem:[#allocation2 + $0x14] sm:$0xf]
    %v99 = vld [vmem:[#allocation2 + $0x18] sm:$0xf]
    %v100 = vld [vmem:[#allocation2 + $0x1c] sm:$0xf]
    %v101 = vld [vmem:[#allocation2 + $0x20] sm:$0xf]
    %v102 = vld [vmem:[#allocation2 + $0x24] sm:$0xf]
    %v103 = vld [vmem:[#allocation2 + $0x28] sm:$0xf]
    %v104 = vld [vmem:[#allocation2 + $0x2c] sm:$0xf]
    %v105 = vld [vmem:[#allocation2 + $0x30] sm:$0xf]
    %v106 = vld [vmem:[#allocation2 + $0x34] sm:$0xf]
    %v107 = vld [vmem:[#allocation2 + $0x38] sm:$0xf]
    %v108 = vld [vmem:[#allocation2 + $0x3c] sm:$0xf]
    %v109 = vld [vmem:[%s3 + $0x1] sm:$0x1]
    %v110 = vlaneseq
    %v111 = vshrl.u32 %v110, 7
    %v112 = vsub.s32 0, %v111
    %v113 = vrot.slane %v109, %v112
    %v130 = vunpack.c.l.b16 %v93
    %v131 = vunpack.c.l.b16 %v94
    %v132 = vunpack.c.l.b16 %v95
    %v133 = vunpack.c.l.b16 %v96
    %v134 = vunpack.c.l.b16 %v97
    %v135 = vunpack.c.l.b16 %v98
    %v136 = vunpack.c.l.b16 %v99
    %v137 = vunpack.c.l.b16 %v100
    %v138 = vunpack.c.l.b16 %v101
    %v139 = vunpack.c.l.b16 %v102
    %v140 = vunpack.c.l.b16 %v103
    %v141 = vunpack.c.l.b16 %v104
    %v142 = vunpack.c.l.b16 %v105
    %v143 = vunpack.c.l.b16 %v106
    %v144 = vunpack.c.l.b16 %v107
    %v145 = vunpack.c.l.b16 %v108
    %v146 = vpack.c.b16 %v131, %v130
    %v147 = vpack.c.b16 %v133, %v132
    %v148 = vpack.c.b16 %v135, %v134
    %v149 = vpack.c.b16 %v137, %v136
    %v150 = vpack.c.b16 %v139, %v138
    %v151 = vpack.c.b16 %v141, %v140
    %v152 = vpack.c.b16 %v143, %v142
    %v153 = vpack.c.b16 %v145, %v144
    %162 = vmatprep.subr.bf16.mxu0 0
    %163 = vmatpush1.bf16.msra.mxu0 %v146
    %164 = vmatprep.subr.bf16.mxu0 0
    %165 = vmatpush1.bf16.msra.mxu0 %v147
    %166 = vmatprep.subr.bf16.mxu0 0
    %167 = vmatpush1.bf16.msra.mxu0 %v148
    %168 = vmatprep.subr.bf16.mxu0 0
    %169 = vmatpush1.bf16.msra.mxu0 %v149
    %170 = vmatprep.subr.bf16.mxu0 0
    %171 = vmatpush1.bf16.msra.mxu0 %v150
    %172 = vmatprep.subr.bf16.mxu0 0
    %173 = vmatpush1.bf16.msra.mxu0 %v151
    %174 = vmatprep.subr.bf16.mxu0 0
    %175 = vmatpush1.bf16.msra.mxu0 %v152
    %176 = vmatprep.subr.bf16.mxu0 0
    %177 = vmatpush1.bf16.msra.mxu0 %v153
    %178 = vmatprep.subr.bf16.mxu0 0
    %179 = vmatpush1.bf16.msra.mxu0 0
    %180 = vmatprep.subr.bf16.mxu0 0
    %181 = vmatpush1.bf16.msra.mxu0 0
    %182 = vmatprep.subr.bf16.mxu0 0
    %183 = vmatpush1.bf16.msra.mxu0 0
    %184 = vmatprep.subr.bf16.mxu0 0
    %185 = vmatpush1.bf16.msra.mxu0 0
    %186 = vmatprep.subr.bf16.mxu0 0
    %187 = vmatpush1.bf16.msra.mxu0 0
    %188 = vmatprep.subr.bf16.mxu0 0
    %189 = vmatpush1.bf16.msra.mxu0 0
    %190 = vmatprep.subr.bf16.mxu0 0
    %191 = vmatpush1.bf16.msra.mxu0 0
    %192 = vmatprep.subr.bf16.mxu0 0
    %193 = vmatpush1.bf16.msra.mxu0 0
    %194 = vmatprep.mubr.bf16.mxu0 0
    %195 = vmatmul.mubr.bf16.gmra.mrb[0].mxu0 %v92
    %v196 = vpop.f32.mrb[0].mxu0
    %v197 = vadd.f32 %v113, %v196
    %v198 = vpop.f32.mrb[0].mxu0
    %v199 = vpop.f32.mrb[0].mxu0
    %v200 = vpop.f32.mrb[0].mxu0
    %201 = vdwg.mxu0
    %vm202 = vcmask 15360
    %203 = vst.msk [vmem:[%s4] sm:$0xff] %vm202, %v197
    // Predicated region
    $region22: #{tpu_custom_call.1} parent=1 // pred_check
      _
    $region23: #{tpu_custom_call.1} parent=1 // pred_check_branch
      %205 = sbr.rel (0) target = $region25
    $region24: #{tpu_custom_call.1} parent=1 // pred_region
      _
    $region25: #{tpu_custom_call.1} parent=1 // pred_fallthru
      _
    // Predicated region
    $region26: #{tpu_custom_call.1} parent=1 // pred_check
      _
    $region27: #{tpu_custom_call.1} parent=1 // pred_check_branch
      %207 = sbr.rel (0) target = $region29
    $region28: #{tpu_custom_call.1} parent=1 // pred_region
      _
    $region29: #{tpu_custom_call.1} parent=1 // pred_fallthru
      _
    %208 = vsyncpa [#allocation3], 1

</llo_original>
